<compile_context>
chip_gen: v7x
topology: tpu7x:2x2x1
jax: 0.10.0
libtpu: 0.0.40
codegen_flags: <defaults>
</compile_context>

<pallas_src>
import jax
import jax.numpy as jnp
from jax.experimental import pallas as pl
from jax.experimental.pallas import tpu as pltpu


def _round_up(x, m):
    return ((x + m - 1) // m) * m


# --------------------------------------------------------------------------
# Small-problem fast path: everything fits VMEM, single block, fused.
# --------------------------------------------------------------------------

def _gcn_small_kernel_bias(inp_ref, w_ref, adj_ref, bias_ref, out_ref):
    support = jnp.dot(inp_ref[...], w_ref[...], preferred_element_type=jnp.float32)
    out = jnp.dot(adj_ref[...], support, preferred_element_type=jnp.float32)
    out_ref[...] = (out + bias_ref[...]).astype(out_ref.dtype)


def _gcn_small_kernel_nobias(inp_ref, w_ref, adj_ref, out_ref):
    support = jnp.dot(inp_ref[...], w_ref[...], preferred_element_type=jnp.float32)
    out_ref[...] = jnp.dot(
        adj_ref[...], support, preferred_element_type=jnp.float32
    ).astype(out_ref.dtype)


# --------------------------------------------------------------------------
# Generic tiled matmul (optional fused bias), K-reduction accumulator.
# --------------------------------------------------------------------------

def _mm_kernel(a_ref, b_ref, o_ref, acc_ref):
    k = pl.program_id(2)

    @pl.when(k == 0)
    def _():
        acc_ref[...] = jnp.zeros_like(acc_ref)

    acc_ref[...] += jnp.dot(a_ref[...], b_ref[...], preferred_element_type=jnp.float32)

    @pl.when(k == pl.num_programs(2) - 1)
    def _():
        o_ref[...] = acc_ref[...].astype(o_ref.dtype)


def _mm_kernel_bias(a_ref, b_ref, bias_ref, o_ref, acc_ref):
    k = pl.program_id(2)

    @pl.when(k == 0)
    def _():
        acc_ref[...] = jnp.zeros_like(acc_ref)

    acc_ref[...] += jnp.dot(a_ref[...], b_ref[...], preferred_element_type=jnp.float32)

    @pl.when(k == pl.num_programs(2) - 1)
    def _():
        o_ref[...] = (acc_ref[...] + bias_ref[...]).astype(o_ref.dtype)


def _tiled_matmul(a, b, bias=None, *, tm=256, tn=256, tk=256):
    """C = A @ B (+ bias).  A: [M, K], B: [K, N], bias: [1, N] or None.

    M, K, N must already be multiples of (tm, tk, tn).
    """
    M, K = a.shape
    K2, N = b.shape
    assert K == K2 and M % tm == 0 and N % tn == 0 and K % tk == 0

    grid = (M // tm, N // tn, K // tk)

    in_specs = [
        pl.BlockSpec((tm, tk), lambda i, j, k: (i, k)),   # A row/K tile
        pl.BlockSpec((tk, tn), lambda i, j, k: (k, j)),   # B K/col tile
    ]
    operands = [a, b]
    kernel = _mm_kernel
    if bias is not None:
        in_specs.append(pl.BlockSpec((1, tn), lambda i, j, k: (0, j)))  # bias cols
        operands.append(bias)
        kernel = _mm_kernel_bias

    return pl.pallas_call(
        kernel,
        out_shape=jax.ShapeDtypeStruct((M, N), jnp.float32),
        grid_spec=pltpu.PrefetchScalarGridSpec(
            num_scalar_prefetch=0,
            grid=grid,
            in_specs=in_specs,
            out_specs=pl.BlockSpec((tm, tn), lambda i, j, k: (i, j)),
            scratch_shapes=[pltpu.VMEM((tm, tn), jnp.float32)],
        ),
        compiler_params=pltpu.CompilerParams(
            dimension_semantics=("parallel", "parallel", "arbitrary"),
        ),
    )(*operands)


# --------------------------------------------------------------------------
# Public forward.
# --------------------------------------------------------------------------

def gcn_forward(inp, adj, weight, bias=None, *, small_vmem_budget=2 * 1024 * 1024):
    """GraphConvolution forward: adj @ (inp @ weight) (+ bias).

    inp:    [N, F_in]   float32
    adj:    [N, N]      float32 (dense view of the sparse adjacency)
    weight: [F_in, F_out]
    bias:   [F_out] or None
    """
    f32 = jnp.float32
    N, f_in = inp.shape
    f_out = weight.shape[1]
    use_bias = bias is not None

    # ---- small-problem fast path: one grid-less fused kernel --------------
    total_bytes = 4 * (N * f_in + f_in * f_out + N * N + 2 * N * f_out + f_out)
    if total_bytes <= small_vmem_budget:
        operands = [inp.astype(f32), weight.astype(f32), adj.astype(f32)]
        kernel = _gcn_small_kernel_nobias
        if use_bias:
            operands.append(bias.astype(f32).reshape(1, f_out))
            kernel = _gcn_small_kernel_bias
        return pl.pallas_call(
            kernel,
            out_shape=jax.ShapeDtypeStruct((N, f_out), f32),
        )(*operands)

    # ---- tiled path: two pipelined matmuls, lane-dense padded layout ------
    TILE = 256
    n_pad = _round_up(N, TILE)
    fin_pad = _round_up(f_in, TILE)
    fout_pad = _round_up(f_out, TILE)

    inp_p = jnp.pad(inp.astype(f32), ((0, n_pad - N), (0, fin_pad - f_in)))
    w_p = jnp.pad(weight.astype(f32), ((0, fin_pad - f_in), (0, fout_pad - f_out)))
    adj_p = jnp.pad(adj.astype(f32), ((0, n_pad - N), (0, n_pad - N)))

    # support = inp @ W   (independently tiled; zero padding keeps math exact)
    support_p = _tiled_matmul(inp_p, w_p, None, tm=TILE, tn=TILE, tk=TILE)

    bias_p = None
    if use_bias:
        bias_p = jnp.pad(bias.astype(f32), (0, fout_pad - f_out)).reshape(1, fout_pad)

    # output = adj @ support (+ bias), bias fused into final-K writeback
    out_p = _tiled_matmul(adj_p, support_p, bias_p, tm=TILE, tn=TILE, tk=TILE)
    return out_p[:N, :f_out]


def init_params(key, input_dim, output_dim, use_bias=True):
    """Deterministic Kaiming-uniform init matching nn.init.kaiming_uniform_."""
    # PyTorch fan_in for a [input_dim, output_dim] 2-D tensor is size(1)=output_dim;
    # kaiming_uniform bound = sqrt(2) * sqrt(3 / fan_in) = sqrt(6 / fan_in).
    bound = (6.0 / output_dim) ** 0.5
    weight = jax.random.uniform(
        key, (input_dim, output_dim), jnp.float32, minval=-bound, maxval=bound
    )
    bias = jnp.zeros((output_dim,), jnp.float32) if use_bias else None
    return weight, bias


def _make_adj(key, n):
    mask = (jax.random.uniform(key, (n, n)) < 0.1).astype(jnp.float32)
    adj = jnp.maximum(mask, mask.T) + jnp.eye(n, dtype=jnp.float32)  # self-loops
    return adj / jnp.sum(adj, axis=1, keepdims=True)  # row-normalized


if __name__ == "__main__":
    key = jax.random.PRNGKey(0)
    k_feat, k_adj, k_w = jax.random.split(key, 3)

    # --- small case (exercises the fused single-block fast path) ---
    N, input_dim, output_dim = 64, 32, 32
    inp = jax.random.normal(k_feat, (N, input_dim), jnp.float32)
    adj = _make_adj(k_adj, N)
    weight, bias = init_params(k_w, input_dim, output_dim, use_bias=True)

    out = jax.block_until_ready(gcn_forward(inp, adj, weight, bias))
    ref = adj @ (inp @ weight) + bias[None, :]
    assert out.shape == (N, output_dim)
    assert jnp.allclose(out, ref, atol=1e-4, rtol=1e-4)

    # no-bias variant
    out_nb = jax.block_until_ready(gcn_forward(inp, adj, weight, None))
    assert jnp.allclose(out_nb, adj @ (inp @ weight), atol=1e-4, rtol=1e-4)

    # --- larger, non-aligned case (exercises the tiled/padded path) ---
    N2, fi2, fo2 = 640, 200, 80
    k1, k2, k3 = jax.random.split(jax.random.PRNGKey(1), 3)
    inp2 = jax.random.normal(k1, (N2, fi2), jnp.float32)
    adj2 = _make_adj(k2, N2)
    w2, b2 = init_params(k3, fi2, fo2, use_bias=True)

    out2 = jax.block_until_ready(gcn_forward(inp2, adj2, w2, b2))
    ref2 = adj2 @ (inp2 @ w2) + b2[None, :]
    assert out2.shape == (N2, fo2)
    assert jnp.allclose(out2, ref2, atol=1e-3, rtol=1e-3)

    print("KERNEL_OK")
</pallas_src>

<mosaic_0001>
module attributes {stable_mosaic.version = 11 : i64} {
  func.func @_gcn_small_kernel_bias(%arg0: memref<64x32xf32, #tpu.memory_space<vmem>>, %arg1: memref<32x32xf32, #tpu.memory_space<vmem>>, %arg2: memref<64x64xf32, #tpu.memory_space<vmem>>, %arg3: memref<1x32xf32, #tpu.memory_space<vmem>>, %arg4: memref<64x32xf32, #tpu.memory_space<vmem>>) attributes {dimension_semantics = [], scalar_prefetch = 0 : i64, scratch_operands = 0 : i64, tpu.core_type = #tpu.core_type<tc>} {
    %c0 = arith.constant 0 : index
    %c0_0 = arith.constant 0 : index
    %0 = vector.load %arg0[%c0, %c0_0] : memref<64x32xf32, #tpu.memory_space<vmem>>, vector<64x32xf32>
    %c0_1 = arith.constant 0 : index
    %c0_2 = arith.constant 0 : index
    %1 = vector.load %arg1[%c0_1, %c0_2] : memref<32x32xf32, #tpu.memory_space<vmem>>, vector<32x32xf32>
    %cst = arith.constant dense<0.000000e+00> : vector<64x32xf32>
    %2 = tpu.matmul %0, %1, %cst {dimension_numbers = #tpu.dot_dimension_numbers<[1], [0], [0], [1], [0, 0, 1, 1], [], []>} : vector<64x32xf32>, vector<32x32xf32>, vector<64x32xf32> -> vector<64x32xf32>
    %c0_3 = arith.constant 0 : index
    %c0_4 = arith.constant 0 : index
    %3 = vector.load %arg2[%c0_3, %c0_4] : memref<64x64xf32, #tpu.memory_space<vmem>>, vector<64x64xf32>
    %cst_5 = arith.constant dense<0.000000e+00> : vector<64x32xf32>
    %4 = tpu.matmul %3, %2, %cst_5 {dimension_numbers = #tpu.dot_dimension_numbers<[1], [0], [0], [1], [0, 0, 1, 1], [], []>} : vector<64x64xf32>, vector<64x32xf32>, vector<64x32xf32> -> vector<64x32xf32>
    %c0_6 = arith.constant 0 : index
    %c0_7 = arith.constant 0 : index
    %5 = vector.load %arg3[%c0_6, %c0_7] : memref<1x32xf32, #tpu.memory_space<vmem>>, vector<1x32xf32>
    %6 = vector.broadcast %5 : vector<1x32xf32> to vector<64x32xf32>
    %7 = arith.addf %4, %6 : vector<64x32xf32>
    %c0_8 = arith.constant 0 : index
    %c0_9 = arith.constant 0 : index
    %8 = vector.load %arg4[%c0_8, %c0_9] : memref<64x32xf32, #tpu.memory_space<vmem>>, vector<64x32xf32>
    tpu.vector_store %arg4[%c0_8, %c0_9], %7 {strides = array<i32>} : memref<64x32xf32, #tpu.memory_space<vmem>>, vector<64x32xf32>,
    return
  }
}

</mosaic_0001>

<llo_original>
// kernel: tpu_custom_call.1
$region0: #{tpu_custom_call.1}
  #allocation0 [shape = 'u32[]', space=smem, size = 0x4, offset = 0x4, fixed_abs, tag = 'smem constant byte address 0x4 - core index']
  #allocation1 [shape = 'u32[144,128]{1,0:T(1,128)}', space=vmem, size = 0x12000, scoped, tag = 'internal scratch']
  %s0 = inlined_call_operand.vmem [shape: f32[64,32], index: 0, kind: input, shape index: {}]
  %s1 = inlined_call_operand.vmem [shape: f32[32,32], index: 1, kind: input, shape index: {}]
  %s2 = inlined_call_operand.vmem [shape: f32[64,64], index: 2, kind: input, shape index: {}]
  %s3 = inlined_call_operand.vmem [shape: f32[1,32], index: 3, kind: input, shape index: {}]
  %s4 = inlined_call_operand.vmem [shape: f32[64,32], index: 4, kind: output, shape index: {}]
  %s5 = sld [smem:[#allocation0]]
  $region26: #{tpu_custom_call.1} parent=0
    _
  %s7 = ssub.s32 1, %s5
  %s8 = scalar_select 0, %s7, %s5
  // Predicated region
  $region2: #{tpu_custom_call.1} parent=0 // pred_check
    _
  $region3: #{tpu_custom_call.1} parent=0 // pred_check_branch
    %10 = sbr.rel (0) target = $region5
  $region4: #{tpu_custom_call.1} parent=0 // pred_region
    _
  $region5: #{tpu_custom_call.1} parent=0 // pred_fallthru
    _
  // Predicated region
  $region6: #{tpu_custom_call.1} parent=0 // pred_check
    _
  $region7: #{tpu_custom_call.1} parent=0 // pred_check_branch
    %12 = sbr.rel (0) target = $region9
  $region8: #{tpu_custom_call.1} parent=0 // pred_region
    _
  $region9: #{tpu_custom_call.1} parent=0 // pred_fallthru
    _
  // Predicated region
  $region10: #{tpu_custom_call.1} parent=0 // pred_check
    _
  $region11: #{tpu_custom_call.1} parent=0 // pred_check_branch
    %14 = sbr.rel (0) target = $region13
  $region12: #{tpu_custom_call.1} parent=0 // pred_region
    _
  $region13: #{tpu_custom_call.1} parent=0 // pred_fallthru
    _
  // Predicated region
  $region14: #{tpu_custom_call.1} parent=0 // pred_check
    _
  $region15: #{tpu_custom_call.1} parent=0 // pred_check_branch
    %16 = sbr.rel (0) target = $region17
  $region16: #{tpu_custom_call.1} parent=0 // pred_region
    _
  $region17: #{tpu_custom_call.1} parent=0 // pred_fallthru
    _
  %v17 = vld [vmem:[%s0] sm:$0xff]
  %v18 = vld [vmem:[%s0 + $0x8] sm:$0xff]
  %v19 = vld [vmem:[%s0 + $0x10] sm:$0xff]
  %v20 = vld [vmem:[%s0 + $0x18] sm:$0xff]
  %v21 = vld [vmem:[%s0 + $0x20] sm:$0xff]
  %v22 = vld [vmem:[%s0 + $0x28] sm:$0xff]
  %v23 = vld [vmem:[%s0 + $0x30] sm:$0xff]
  %v24 = vld [vmem:[%s0 + $0x38] sm:$0xff]
  %v25 = vld [vmem:[%s1] sm:$0xff]
  %v26 = vld [vmem:[%s1 + $0x8] sm:$0xff]
  %v27 = vld [vmem:[%s1 + $0x10] sm:$0xff]
  %v28 = vld [vmem:[%s1 + $0x18] sm:$0xff]
  %vm29 = vcmask 261120
  %v31 = vsel %vm29, %v17, 0
  %v34 = vsel %vm29, %v18, 0
  %v37 = vsel %vm29, %v19, 0
  %v40 = vsel %vm29, %v20, 0
  %v43 = vsel %vm29, %v21, 0
  %v46 = vsel %vm29, %v22, 0
  %v49 = vsel %vm29, %v23, 0
  %v52 = vsel %vm29, %v24, 0
  %54 = vmatprep.subr.mxu0 0.0
  %55 = vmatpush1.msra.mxu0 %v25
  %56 = vmatprep.subr.mxu0 0.0
  %57 = vmatpush1.msra.mxu0 %v26
  %58 = vmatprep.subr.mxu0 0.0
  %59 = vmatpush1.msra.mxu0 %v27
  %60 = vmatprep.subr.mxu0 0.0
  %61 = vmatpush1.msra.mxu0 %v28
  %62 = vmatprep.subr.mxu0 0.0
  %63 = vmatpush1.msra.mxu0 0.0
  %64 = vmatprep.subr.mxu0 0.0
  %65 = vmatpush1.msra.mxu0 0.0
  %66 = vmatprep.subr.mxu0 0.0
  %67 = vmatpush1.msra.mxu0 0.0
  %68 = vmatprep.subr.mxu0 0.0
  %69 = vmatpush1.msra.mxu0 0.0
  %70 = vmatprep.subr.mxu0 0.0
  %71 = vmatpush1.msra.mxu0 0.0
  %72 = vmatprep.subr.mxu0 0.0
  %73 = vmatpush1.msra.mxu0 0.0
  %74 = vmatprep.subr.mxu0 0.0
  %75 = vmatpush1.msra.mxu0 0.0
  %76 = vmatprep.subr.mxu0 0.0
  %77 = vmatpush1.msra.mxu0 0.0
  %78 = vmatprep.subr.mxu0 0.0
  %79 = vmatpush1.msra.mxu0 0.0
  %80 = vmatprep.subr.mxu0 0.0
  %81 = vmatpush1.msra.mxu0 0.0
  %82 = vmatprep.subr.mxu0 0.0
  %83 = vmatpush1.msra.mxu0 0.0
  %84 = vmatprep.subr.mxu0 0.0
  %85 = vmatpush1.msra.mxu0 0.0
  %86 = vmatprep.subr.mxu0 0.0
  %87 = vmatpush1.msra.mxu0 0.0
  %88 = vmatprep.subr.mxu0 0.0
  %89 = vmatpush1.msra.mxu0 0.0
  %90 = vmatprep.subr.mxu0 0.0
  %91 = vmatpush1.msra.mxu0 0.0
  %92 = vmatprep.subr.mxu0 0.0
  %93 = vmatpush1.msra.mxu0 0.0
  %94 = vmatprep.subr.mxu0 0.0
  %95 = vmatpush1.msra.mxu0 0.0
  %96 = vmatprep.subr.mxu0 0.0
  %97 = vmatpush1.msra.mxu0 0.0
  %98 = vmatprep.subr.mxu0 0.0
  %99 = vmatpush1.msra.mxu0 0.0
  %100 = vmatprep.subr.mxu0 0.0
  %101 = vmatpush1.msra.mxu0 0.0
  %102 = vmatprep.subr.mxu0 0.0
  %103 = vmatpush1.msra.mxu0 0.0
  %104 = vmatprep.subr.mxu0 0.0
  %105 = vmatpush1.msra.mxu0 0.0
  %106 = vmatprep.subr.mxu0 0.0
  %107 = vmatpush1.msra.mxu0 0.0
  %108 = vmatprep.subr.mxu0 0.0
  %109 = vmatpush1.msra.mxu0 0.0
  %110 = vmatprep.subr.mxu0 0.0
  %111 = vmatpush1.msra.mxu0 0.0
  %112 = vmatprep.subr.mxu0 0.0
  %113 = vmatpush1.msra.mxu0 0.0
  %114 = vmatprep.subr.mxu0 0.0
  %115 = vmatpush1.msra.mxu0 0.0
  %116 = vmatprep.subr.mxu0 0.0
  %117 = vmatpush1.msra.mxu0 0.0
  %118 = vmatprep.mubr.f32.mxu0 0.0
  %119 = vmatmul.mubr.f32.gmra.mrb[0].mxu0 %v31
  %v120 = vpop.f32.mrb[0].mxu0
  %v121 = vadd.f32 0.0, %v120
  %v122 = vpop.f32.mrb[0].mxu0
  %123 = vmatprep.mubr.f32.mxu0 0.0
  %124 = vmatmul.mubr.f32.gmra.mrb[0].mxu0 %v34
  %v125 = vpop.f32.mrb[0].mxu0
  %v126 = vadd.f32 0.0, %v125
  %v127 = vpop.f32.mrb[0].mxu0
  %128 = vmatprep.mubr.f32.mxu0 0.0
  %129 = vmatmul.mubr.f32.gmra.mrb[0].mxu0 %v37
  %v130 = vpop.f32.mrb[0].mxu0
  %v131 = vadd.f32 0.0, %v130
  %v132 = vpop.f32.mrb[0].mxu0
  %133 = vmatprep.mubr.f32.mxu0 0.0
  %134 = vmatmul.mubr.f32.gmra.mrb[0].mxu0 %v40
  %v135 = vpop.f32.mrb[0].mxu0
  %v136 = vadd.f32 0.0, %v135
  %v137 = vpop.f32.mrb[0].mxu0
  %138 = vmatprep.mubr.f32.mxu0 0.0
  %139 = vmatmul.mubr.f32.gmra.mrb[0].mxu0 %v43
  %v140 = vpop.f32.mrb[0].mxu0
  %v141 = vadd.f32 0.0, %v140
  %v142 = vpop.f32.mrb[0].mxu0
  %143 = vmatprep.mubr.f32.mxu0 0.0
  %144 = vmatmul.mubr.f32.gmra.mrb[0].mxu0 %v46
  %v145 = vpop.f32.mrb[0].mxu0
  %v146 = vadd.f32 0.0, %v145
  %v147 = vpop.f32.mrb[0].mxu0
  %148 = vmatprep.mubr.f32.mxu0 0.0
  %149 = vmatmul.mubr.f32.gmra.mrb[0].mxu0 %v49
  %v150 = vpop.f32.mrb[0].mxu0
  %v151 = vadd.f32 0.0, %v150
  %v152 = vpop.f32.mrb[0].mxu0
  %153 = vmatprep.mubr.f32.mxu0 0.0
  %154 = vmatmul.mubr.f32.gmra.mrb[0].mxu0 %v52
  %v155 = vpop.f32.mrb[0].mxu0
  %v156 = vadd.f32 0.0, %v155
  %v157 = vpop.f32.mrb[0].mxu0
  %158 = vdwg.mxu0
  %v159 = vld [vmem:[%s2] sm:$0xff]
  %v160 = vld [vmem:[%s2 + $0x8] sm:$0xff]
  %v161 = vld [vmem:[%s2 + $0x10] sm:$0xff]
  %v162 = vld [vmem:[%s2 + $0x18] sm:$0xff]
  %v163 = vld [vmem:[%s2 + $0x20] sm:$0xff]
  %v164 = vld [vmem:[%s2 + $0x28] sm:$0xff]
  %v165 = vld [vmem:[%s2 + $0x30] sm:$0xff]
  %v166 = vld [vmem:[%s2 + $0x38] sm:$0xff]
  %v167 = vld [vmem:[%s3] sm:$0x1]
  %v169 = vlaneseq
  %v170 = vshrl.u32 %v169, 7
  %v171 = vsub.s32 0, %v170
  %v172 = vrot.slane %v167, %v171
  %vm174 = vcmask 523264
  %v176 = vsel %vm174, %v159, 0
  %v179 = vsel %vm174, %v160, 0
  %v182 = vsel %vm174, %v161, 0
  %v185 = vsel %vm174, %v162, 0
  %v188 = vsel %vm174, %v163, 0
  %v191 = vsel %vm174, %v164, 0
  %v194 = vsel %vm174, %v165, 0
  %v197 = vsel %vm174, %v166, 0
  %199 = vmatprep.subr.mxu0 0.0
  %200 = vmatpush1.msra.mxu0 %v121
  %201 = vmatprep.subr.mxu0 0.0
  %202 = vmatpush1.msra.mxu0 %v126
  %203 = vmatprep.subr.mxu0 0.0
  %204 = vmatpush1.msra.mxu0 %v131
  %205 = vmatprep.subr.mxu0 0.0
  %206 = vmatpush1.msra.mxu0 %v136
  %207 = vmatprep.subr.mxu0 0.0
  %208 = vmatpush1.msra.mxu0 %v141
  %209 = vmatprep.subr.mxu0 0.0
  %210 = vmatpush1.msra.mxu0 %v146
  %211 = vmatprep.subr.mxu0 0.0
  %212 = vmatpush1.msra.mxu0 %v151
  %213 = vmatprep.subr.mxu0 0.0
  %214 = vmatpush1.msra.mxu0 %v156
  %215 = vmatprep.subr.mxu0 0.0
  %216 = vmatpush1.msra.mxu0 0.0
  %217 = vmatprep.subr.mxu0 0.0
  %218 = vmatpush1.msra.mxu0 0.0
  %219 = vmatprep.subr.mxu0 0.0
  %220 = vmatpush1.msra.mxu0 0.0
  %221 = vmatprep.subr.mxu0 0.0
  %222 = vmatpush1.msra.mxu0 0.0
  %223 = vmatprep.subr.mxu0 0.0
  %224 = vmatpush1.msra.mxu0 0.0
  %225 = vmatprep.subr.mxu0 0.0
  %226 = vmatpush1.msra.mxu0 0.0
  %227 = vmatprep.subr.mxu0 0.0
  %228 = vmatpush1.msra.mxu0 0.0
  %229 = vmatprep.subr.mxu0 0.0
  %230 = vmatpush1.msra.mxu0 0.0
  %231 = vmatprep.subr.mxu0 0.0
  %232 = vmatpush1.msra.mxu0 0.0
  %233 = vmatprep.subr.mxu0 0.0
  %234 = vmatpush1.msra.mxu0 0.0
  %235 = vmatprep.subr.mxu0 0.0
  %236 = vmatpush1.msra.mxu0 0.0
  %237 = vmatprep.subr.mxu0 0.0
  %238 = vmatpush1.msra.mxu0 0.0
  %239 = vmatprep.subr.mxu0 0.0
  %240 = vmatpush1.msra.mxu0 0.0
  %241 = vmatprep.subr.mxu0 0.0
  %242 = vmatpush1.msra.mxu0 0.0
  %243 = vmatprep.subr.mxu0 0.0
  %244 = vmatpush1.msra.mxu0 0.0
  %245 = vmatprep.subr.mxu0 0.0
  %246 = vmatpush1.msra.mxu0 0.0
  %247 = vmatprep.subr.mxu0 0.0
  %248 = vmatpush1.msra.mxu0 0.0
  %249 = vmatprep.subr.mxu0 0.0
  %250 = vmatpush1.msra.mxu0 0.0
  %251 = vmatprep.subr.mxu0 0.0
  %252 = vmatpush1.msra.mxu0 0.0
  %253 = vmatprep.subr.mxu0 0.0
  %254 = vmatpush1.msra.mxu0 0.0
  %255 = vmatprep.subr.mxu0 0.0
  %256 = vmatpush1.msra.mxu0 0.0
  %257 = vmatprep.subr.mxu0 0.0
  %258 = vmatpush1.msra.mxu0 0.0
  %259 = vmatprep.subr.mxu0 0.0
  %260 = vmatpush1.msra.mxu0 0.0
  %261 = vmatprep.subr.mxu0 0.0
  %262 = vmatpush1.msra.mxu0 0.0
  %263 = vmatprep.mubr.f32.mxu0 0.0
  %264 = vmatmul.mubr.f32.gmra.mrb[0].mxu0 %v176
  %v265 = vpop.f32.mrb[0].mxu0
  %v266 = vadd.f32 %v172, %v265
  %v267 = vpop.f32.mrb[0].mxu0
  %268 = vmatprep.mubr.f32.mxu0 0.0
  %269 = vmatmul.mubr.f32.gmra.mrb[0].mxu0 %v179
  %v270 = vpop.f32.mrb[0].mxu0
  %v271 = vadd.f32 %v172, %v270
  %v272 = vpop.f32.mrb[0].mxu0
  %273 = vmatprep.mubr.f32.mxu0 0.0
  %274 = vmatmul.mubr.f32.gmra.mrb[0].mxu0 %v182
  %v275 = vpop.f32.mrb[0].mxu0
  %v276 = vadd.f32 %v172, %v275
  %v277 = vpop.f32.mrb[0].mxu0
  %278 = vmatprep.mubr.f32.mxu0 0.0
  %279 = vmatmul.mubr.f32.gmra.mrb[0].mxu0 %v185
  %v280 = vpop.f32.mrb[0].mxu0
  %v281 = vadd.f32 %v172, %v280
  %v282 = vpop.f32.mrb[0].mxu0
  %283 = vmatprep.mubr.f32.mxu0 0.0
  %284 = vmatmul.mubr.f32.gmra.mrb[0].mxu0 %v188
  %v285 = vpop.f32.mrb[0].mxu0
  %v286 = vadd.f32 %v172, %v285
  %v287 = vpop.f32.mrb[0].mxu0
  %288 = vmatprep.mubr.f32.mxu0 0.0
  %289 = vmatmul.mubr.f32.gmra.mrb[0].mxu0 %v191
  %v290 = vpop.f32.mrb[0].mxu0
  %v291 = vadd.f32 %v172, %v290
  %v292 = vpop.f32.mrb[0].mxu0
  %293 = vmatprep.mubr.f32.mxu0 0.0
  %294 = vmatmul.mubr.f32.gmra.mrb[0].mxu0 %v194
  %v295 = vpop.f32.mrb[0].mxu0
  %v296 = vadd.f32 %v172, %v295
  %v297 = vpop.f32.mrb[0].mxu0
  %298 = vmatprep.mubr.f32.mxu0 0.0
  %299 = vmatmul.mubr.f32.gmra.mrb[0].mxu0 %v197
  %v300 = vpop.f32.mrb[0].mxu0
  %v301 = vadd.f32 %v172, %v300
  %v302 = vpop.f32.mrb[0].mxu0
  %303 = vdwg.mxu0
  %304 = vst.msk [vmem:[%s4] sm:$0xff] %vm29, %v266
  %305 = vst.msk [vmem:[%s4 + $0x8] sm:$0xff] %vm29, %v271
  %306 = vst.msk [vmem:[%s4 + $0x10] sm:$0xff] %vm29, %v276
  %307 = vst.msk [vmem:[%s4 + $0x18] sm:$0xff] %vm29, %v281
  %308 = vst.msk [vmem:[%s4 + $0x20] sm:$0xff] %vm29, %v286
  %309 = vst.msk [vmem:[%s4 + $0x28] sm:$0xff] %vm29, %v291
  %310 = vst.msk [vmem:[%s4 + $0x30] sm:$0xff] %vm29, %v296
  %311 = vst.msk [vmem:[%s4 + $0x38] sm:$0xff] %vm29, %v301
  // Predicated region
  $region18: #{tpu_custom_call.1} parent=0 // pred_check
    _
  $region19: #{tpu_custom_call.1} parent=0 // pred_check_branch
    %313 = sbr.rel (0) target = $region21
  $region20: #{tpu_custom_call.1} parent=0 // pred_region
    _
  $region21: #{tpu_custom_call.1} parent=0 // pred_fallthru
    _
  // Predicated region
  $region22: #{tpu_custom_call.1} parent=0 // pred_check
    _
  $region23: #{tpu_custom_call.1} parent=0 // pred_check_branch
    %315 = sbr.rel (0) target = $region25
  $region24: #{tpu_custom_call.1} parent=0 // pred_region
    _
  $region25: #{tpu_custom_call.1} parent=0 // pred_fallthru
    _

</llo_original>
